<compile_context>
chip_gen: v6e
topology: v6e:2x2x1
jax: 0.10.0
libtpu: 0.0.40
codegen_flags: <defaults>
</compile_context>

<pallas_src>
import math

import numpy as np
import jax
import jax.numpy as jnp
from jax import lax
from jax.experimental import pallas as pl
from jax.experimental.pallas import tpu as pltpu

# ---- model hyper-parameters (small, consistent with the module) ----
HIDDEN = 32
NUM_HEADS = 2                        # value heads; q/k use 2*NUM_HEADS heads
HEAD_DIM = HIDDEN // NUM_HEADS // 2  # 8
SEQ = 8
BATCH = 2
DEPTH = 1
EPS = 1e-5


def _rmsnorm(v, g):
    var = jnp.mean(v * v, axis=-1, keepdims=True)
    return v * lax.rsqrt(var + EPS) * g


def _softmax(s):
    m = jnp.max(s, axis=-1, keepdims=True)
    e = jnp.exp(s - m)
    return e * pl.reciprocal(jnp.sum(e, axis=-1, keepdims=True), approx=True)


def diff_transformer_layer_kernel(
    scal_ref,       # SMEM (1,): lambda_full
    x_ref,          # (B*S, D) f32
    wqkv_ref,       # (D, 5D) bf16: [wq*scale | (wq*scale)@R | wk | wk@R | wv]
    wo_ref,         # (D, D)  bf16
    w13_ref,        # (D, 6D) bf16: [w1 | w3]
    w2_ref,         # (3D, D) bf16
    gam_ref,        # (3, D)  f32: [attn_g ; ffn_g ; subln_g*(1-lambda_init), 0-pad]
    cossin_ref,     # (B*S, 2D) f32: [cos | sin], tiled over heads & batch
    mask_ref,       # (B*S, B*S) f32 block-diagonal causal bias (0 / -1e30)
    o_ref,          # (B*S, D) f32
):
    D = HIDDEN
    HD = HEAD_DIM
    HD2 = 2 * HEAD_DIM

    lam = scal_ref[0]
    x = x_ref[...]

    # loop-invariant reads (hoisted)
    attn_g = gam_ref[0:1, :]
    ffn_g = gam_ref[1:2, :]
    subln_g = gam_ref[2:3, 0:HD2]          # already scaled by (1 - lambda_init)
    bias = mask_ref[...]
    cos = cossin_ref[:, 0:D]
    sin = cossin_ref[:, D:2 * D]

    # ---------------- differential attention sub-layer ----------------
    xn = _rmsnorm(x, attn_g)
    qkv = jnp.dot(xn.astype(jnp.bfloat16), wqkv_ref[...],
                  preferred_element_type=jnp.float32)                    # (BS, 5D)

    # Full-width RoPE: rotate-half matrix R and the 1/sqrt(head_dim) q-scale are
    # folded into the packed projection columns (prepare_params).
    q = (qkv[:, 0 * D:1 * D] * cos + qkv[:, 1 * D:2 * D] * sin).astype(jnp.bfloat16)
    k = (qkv[:, 2 * D:3 * D] * cos + qkv[:, 3 * D:4 * D] * sin).astype(jnp.bfloat16)
    v = qkv[:, 4 * D:5 * D].astype(jnp.bfloat16)

    dn = (((1,), (1,)), ((), ()))          # contract last dims: q @ k^T

    o_heads = []
    for h in range(NUM_HEADS):             # static unroll, NUM_HEADS is tiny
        c0 = 2 * h * HD
        s1 = lax.dot_general(q[:, c0:c0 + HD], k[:, c0:c0 + HD], dn,
                             preferred_element_type=jnp.float32) + bias
        s2 = lax.dot_general(q[:, c0 + HD:c0 + HD2], k[:, c0 + HD:c0 + HD2], dn,
                             preferred_element_type=jnp.float32) + bias
        ad = _softmax(s1) - lam * _softmax(s2)                # differential attention
        o_h = jnp.dot(ad.astype(jnp.bfloat16), v[:, h * HD2:(h + 1) * HD2],
                      preferred_element_type=jnp.float32)     # (BS, 2*HD)
        o_heads.append(_rmsnorm(o_h, subln_g))

    # single fused output projection instead of per-head accumulate
    o_all = jnp.concatenate(o_heads, axis=1).astype(jnp.bfloat16)        # (BS, D)
    attn_out = jnp.dot(o_all, wo_ref[...], preferred_element_type=jnp.float32)

    h1 = x + attn_out      # TODO(synk): dropout treated as identity (eval mode)

    # ---------------- SwishGLU FFN sub-layer ----------------
    inner = 3 * D
    hn = _rmsnorm(h1, ffn_g)
    ag = jnp.dot(hn.astype(jnp.bfloat16), w13_ref[...],
                 preferred_element_type=jnp.float32)                     # (BS, 6D)
    a = ag[:, 0:inner]
    g = ag[:, inner:2 * inner]
    # silu(a) = a * sigmoid(a); exp argument clamped so approx reciprocal never sees inf
    sig = pl.reciprocal(1.0 + jnp.exp(jnp.minimum(-a, 60.0)), approx=True)
    y = jnp.dot((a * sig * g).astype(jnp.bfloat16), w2_ref[...],
                preferred_element_type=jnp.float32)
    o_ref[...] = h1 + y


def _rotate_half_matrix(d, head_dim):
    # R such that (t @ R) == per-head rotate_half(t) for row-vectors t of width d.
    half = head_dim // 2
    R = np.zeros((d, d), np.float32)
    for s in range(d // head_dim):
        base = s * head_dim
        for l in range(head_dim):
            j = base + l
            if l < half:
                R[base + l + half, j] = -1.0     # rot[j] = -t[j + half]
            else:
                R[base + l - half, j] = 1.0      # rot[j] =  t[j - half]
    return jnp.asarray(R)


def prepare_params(params, batch, seq):
    """One-time packing of all parameter-derived constants (hoisted off the call path)."""
    D = HIDDEN
    B, S = batch, seq
    n_qk_heads = 2 * NUM_HEADS
    scale = HEAD_DIM ** -0.5
    lambda_init = 0.8 - 0.6 * math.exp(-0.3 * DEPTH)

    # lambda_full scalar (SMEM)
    lambda_1 = jnp.exp(jnp.sum(params["lambda_q1"] * params["lambda_k1"]))
    lambda_2 = jnp.exp(jnp.sum(params["lambda_q2"] * params["lambda_k2"]))
    lambda_full = lambda_1 - lambda_2 + lambda_init
    scal = jnp.reshape(lambda_full, (1,)).astype(jnp.float32)

    # fused projections, weights stored bf16 for the MXU
    R = _rotate_half_matrix(D, HEAD_DIM)
    wq_s = params["wq"] * scale
    wqkv = jnp.concatenate(
        [wq_s, wq_s @ R, params["wk"], params["wk"] @ R, params["wv"]],
        axis=1).astype(jnp.bfloat16)                                     # (D, 5D)
    w13 = jnp.concatenate([params["w1"], params["w3"]], axis=1).astype(jnp.bfloat16)
    wo = params["wo"].astype(jnp.bfloat16)
    w2 = params["w2"].astype(jnp.bfloat16)

    # packed gamma slab: attn_g / ffn_g / subln_g*(1-lambda_init)
    gam = jnp.zeros((3, D), jnp.float32)
    gam = gam.at[0, :].set(params["attn_g"].reshape(-1))
    gam = gam.at[1, :].set(params["ffn_g"].reshape(-1))
    gam = gam.at[2, :2 * HEAD_DIM].set(
        params["subln_g"].reshape(-1) * jnp.float32(1.0 - lambda_init))

    # RoPE tables (rotate-half convention), tiled over q/k heads and batch rows
    half = HEAD_DIM // 2
    inv_freq = 1.0 / (10000.0 ** (jnp.arange(half, dtype=jnp.float32) / half))
    ang = jnp.arange(S, dtype=jnp.float32)[:, None] * inv_freq[None, :]
    cos1 = jnp.concatenate([jnp.cos(ang), jnp.cos(ang)], axis=-1)        # (S, HD)
    sin1 = jnp.concatenate([jnp.sin(ang), jnp.sin(ang)], axis=-1)
    cos = jnp.tile(cos1, (B, n_qk_heads))                                # (BS, D)
    sin = jnp.tile(sin1, (B, n_qk_heads))
    cossin = jnp.concatenate([cos, sin], axis=1).astype(jnp.float32)     # (BS, 2D)

    # block-diagonal causal bias over the flattened (B*S, B*S) score matrix
    pos = jnp.tile(jnp.arange(S), B)
    bidx = jnp.repeat(jnp.arange(B), S)
    allowed = (bidx[:, None] == bidx[None, :]) & (pos[None, :] <= pos[:, None])
    mask = jnp.where(allowed, 0.0, -1e30).astype(jnp.float32)            # (BS, BS)

    return dict(scal=scal, wqkv=wqkv, wo=wo, w13=w13, w2=w2,
                gam=gam, cossin=cossin, mask=mask)


@jax.jit
def _forward(x, scal, wqkv, wo, w13, w2, gam, cossin, mask):
    B, S, D = x.shape
    BS = B * S

    vmem = pl.BlockSpec(memory_space=pltpu.MemorySpace.VMEM)
    smem = pl.BlockSpec(memory_space=pltpu.MemorySpace.SMEM)

    # advisory cost hint so XLA can overlap this tiny custom call
    flops = (2 * BS * D * (5 * D)                        # qkv projection
             + NUM_HEADS * 2 * (2 * BS * BS * HEAD_DIM)  # s1/s2 scores
             + NUM_HEADS * (2 * BS * BS * 2 * HEAD_DIM)  # attn @ v
             + 2 * BS * D * D                            # out projection
             + 2 * BS * D * (6 * D)                      # w1|w3
             + 2 * BS * (3 * D) * D)                     # w2
    transcendentals = 2 * NUM_HEADS * BS * BS + BS * 3 * D
    bytes_accessed = (2 * BS * D * 4 + BS * 2 * D * 4 + BS * BS * 4 + 3 * D * 4
                      + 2 * (5 * D * D + D * D + 6 * D * D + 3 * D * D) + 4)

    out = pl.pallas_call(
        diff_transformer_layer_kernel,
        out_shape=jax.ShapeDtypeStruct((BS, D), jnp.float32),
        in_specs=[smem] + [vmem] * 8,
        out_specs=vmem,
        cost_estimate=pl.CostEstimate(flops=flops,
                                      transcendentals=transcendentals,
                                      bytes_accessed=bytes_accessed),
    )(scal, x.reshape(BS, D).astype(jnp.float32),
      wqkv, wo, w13, w2, gam, cossin, mask)
    return out.reshape(B, S, D)


def diff_transformer_layer(x, prep):
    return _forward(x, prep["scal"], prep["wqkv"], prep["wo"], prep["w13"],
                    prep["w2"], prep["gam"], prep["cossin"], prep["mask"])


def init_params(key):
    D, inner = HIDDEN, 3 * HIDDEN
    ks = jax.random.split(key, 11)
    n = lambda k, shape, s: (s * jax.random.normal(k, shape)).astype(jnp.float32)
    return {
        "wq": n(ks[0], (D, D), 0.02),
        "wk": n(ks[1], (D, D), 0.02),
        "wv": n(ks[2], (D, D), 0.02),
        "wo": n(ks[3], (D, D), 0.02),
        "w1": n(ks[4], (D, inner), 0.02),
        "w3": n(ks[5], (D, inner), 0.02),
        "w2": n(ks[6], (inner, D), 0.02),
        "lambda_q1": n(ks[7], (HEAD_DIM,), 0.1),
        "lambda_k1": n(ks[8], (HEAD_DIM,), 0.1),
        "lambda_q2": n(ks[9], (HEAD_DIM,), 0.1),
        "lambda_k2": n(ks[10], (HEAD_DIM,), 0.1),
        "attn_g": jnp.ones((1, D), jnp.float32),
        "ffn_g": jnp.ones((1, D), jnp.float32),
        "subln_g": jnp.ones((1, 2 * HEAD_DIM), jnp.float32),
    }


if __name__ == "__main__":
    key = jax.random.PRNGKey(0)
    k_x, k_p = jax.random.split(key)
    x = jax.random.normal(k_x, (BATCH, SEQ, HIDDEN), dtype=jnp.float32)
    params = init_params(k_p)

    # one-time preprocessing (cached across calls)
    prep = prepare_params(params, BATCH, SEQ)
    jax.block_until_ready(prep)

    out = diff_transformer_layer(x, prep)
    jax.block_until_ready(out)
    assert out.shape == (BATCH, SEQ, HIDDEN)
    assert bool(jnp.all(jnp.isfinite(out)))
    print("KERNEL_OK")
</pallas_src>

<mosaic_0001>
module attributes {stable_mosaic.version = 11 : i64} {
  func.func @diff_transformer_layer_kernel(%arg0: memref<1xf32, #tpu.memory_space<smem>>, %arg1: memref<16x32xf32, #tpu.memory_space<vmem>>, %arg2: memref<32x160xbf16, #tpu.memory_space<vmem>>, %arg3: memref<32x32xbf16, #tpu.memory_space<vmem>>, %arg4: memref<32x192xbf16, #tpu.memory_space<vmem>>, %arg5: memref<96x32xbf16, #tpu.memory_space<vmem>>, %arg6: memref<3x32xf32, #tpu.memory_space<vmem>>, %arg7: memref<16x64xf32, #tpu.memory_space<vmem>>, %arg8: memref<16x16xf32, #tpu.memory_space<vmem>>, %arg9: memref<16x32xf32, #tpu.memory_space<vmem>>) attributes {dimension_semantics = [], scalar_prefetch = 0 : i64, scratch_operands = 0 : i64, tpu.core_type = #tpu.core_type<tc>} {
    %c0 = arith.constant 0 : index
    %0 = memref.load %arg0[%c0] : memref<1xf32, #tpu.memory_space<smem>>
    %c0_0 = arith.constant 0 : index
    %c0_1 = arith.constant 0 : index
    %1 = vector.load %arg1[%c0_0, %c0_1] : memref<16x32xf32, #tpu.memory_space<vmem>>, vector<16x32xf32>
    %c0_2 = arith.constant 0 : index
    %c0_3 = arith.constant 0 : index
    %2 = vector.load %arg6[%c0_2, %c0_3] : memref<3x32xf32, #tpu.memory_space<vmem>>, vector<1x32xf32>
    %c1 = arith.constant 1 : index
    %c0_4 = arith.constant 0 : index
    %3 = vector.load %arg6[%c1, %c0_4] : memref<3x32xf32, #tpu.memory_space<vmem>>, vector<1x32xf32>
    %c2 = arith.constant 2 : index
    %c0_5 = arith.constant 0 : index
    %4 = vector.load %arg6[%c2, %c0_5] : memref<3x32xf32, #tpu.memory_space<vmem>>, vector<1x16xf32>
    %c0_6 = arith.constant 0 : index
    %c0_7 = arith.constant 0 : index
    %5 = vector.load %arg8[%c0_6, %c0_7] : memref<16x16xf32, #tpu.memory_space<vmem>>, vector<16x16xf32>
    %c0_8 = arith.constant 0 : index
    %c0_9 = arith.constant 0 : index
    %6 = vector.load %arg7[%c0_8, %c0_9] : memref<16x64xf32, #tpu.memory_space<vmem>>, vector<16x32xf32>
    %c0_10 = arith.constant 0 : index
    %c32 = arith.constant 32 : index
    %7 = vector.load %arg7[%c0_10, %c32] : memref<16x64xf32, #tpu.memory_space<vmem>>, vector<16x32xf32>
    %8 = arith.mulf %1, %1 : vector<16x32xf32>
    %cst = arith.constant dense<0.000000e+00> : vector<16xf32>
    %9 = vector.multi_reduction <add>, %8, %cst [1] : vector<16x32xf32> to vector<16xf32>
    %10 = vector.shape_cast %9 : vector<16xf32> to vector<16x1xf32>
    %cst_11 = arith.constant 3.200000e+01 : f32
    %11 = vector.broadcast %cst_11 : f32 to vector<16x1xf32>
    %12 = arith.divf %10, %11 : vector<16x1xf32>
    %cst_12 = arith.constant 9.99999974E-6 : f32
    %13 = vector.broadcast %cst_12 : f32 to vector<16x1xf32>
    %14 = arith.addf %12, %13 : vector<16x1xf32>
    %15 = math.rsqrt %14 : vector<16x1xf32>
    %16 = vector.broadcast %15 : vector<16x1xf32> to vector<16x32xf32>
    %17 = arith.mulf %1, %16 : vector<16x32xf32>
    %18 = vector.broadcast %2 : vector<1x32xf32> to vector<16x32xf32>
    %19 = arith.mulf %17, %18 : vector<16x32xf32>
    %20 = arith.truncf %19 : vector<16x32xf32> to vector<16x32xbf16>
    %c0_13 = arith.constant 0 : index
    %c0_14 = arith.constant 0 : index
    %21 = vector.load %arg2[%c0_13, %c0_14] : memref<32x160xbf16, #tpu.memory_space<vmem>>, vector<32x160xbf16>
    %cst_15 = arith.constant dense<0.000000e+00> : vector<16x160xf32>
    %22 = tpu.matmul %20, %21, %cst_15 {dimension_numbers = #tpu.dot_dimension_numbers<[1], [0], [0], [1], [0, 0, 1, 1], [], []>} : vector<16x32xbf16>, vector<32x160xbf16>, vector<16x160xf32> -> vector<16x160xf32>
    %23 = vector.extract_strided_slice %22 {offsets = [0, 0], sizes = [16, 32], strides = [1, 1]} : vector<16x160xf32> to vector<16x32xf32>
    %24 = arith.mulf %23, %6 : vector<16x32xf32>
    %25 = vector.extract_strided_slice %22 {offsets = [0, 32], sizes = [16, 32], strides = [1, 1]} : vector<16x160xf32> to vector<16x32xf32>
    %26 = arith.mulf %25, %7 : vector<16x32xf32>
    %27 = arith.addf %24, %26 : vector<16x32xf32>
    %28 = arith.truncf %27 : vector<16x32xf32> to vector<16x32xbf16>
    %29 = vector.extract_strided_slice %22 {offsets = [0, 64], sizes = [16, 32], strides = [1, 1]} : vector<16x160xf32> to vector<16x32xf32>
    %30 = arith.mulf %29, %6 : vector<16x32xf32>
    %31 = vector.extract_strided_slice %22 {offsets = [0, 96], sizes = [16, 32], strides = [1, 1]} : vector<16x160xf32> to vector<16x32xf32>
    %32 = arith.mulf %31, %7 : vector<16x32xf32>
    %33 = arith.addf %30, %32 : vector<16x32xf32>
    %34 = arith.truncf %33 : vector<16x32xf32> to vector<16x32xbf16>
    %35 = vector.extract_strided_slice %22 {offsets = [0, 128], sizes = [16, 32], strides = [1, 1]} : vector<16x160xf32> to vector<16x32xf32>
    %36 = arith.truncf %35 : vector<16x32xf32> to vector<16x32xbf16>
    %37 = vector.extract_strided_slice %28 {offsets = [0, 0], sizes = [16, 8], strides = [1, 1]} : vector<16x32xbf16> to vector<16x8xbf16>
    %38 = vector.extract_strided_slice %34 {offsets = [0, 0], sizes = [16, 8], strides = [1, 1]} : vector<16x32xbf16> to vector<16x8xbf16>
    %cst_16 = arith.constant dense<0.000000e+00> : vector<16x16xf32>
    %39 = tpu.matmul %37, %38, %cst_16 {dimension_numbers = #tpu.dot_dimension_numbers<[1], [1], [0], [0], [0, 0, 1, 0], [], []>} : vector<16x8xbf16>, vector<16x8xbf16>, vector<16x16xf32> -> vector<16x16xf32>
    %40 = arith.addf %39, %5 : vector<16x16xf32>
    %41 = vector.extract_strided_slice %28 {offsets = [0, 8], sizes = [16, 8], strides = [1, 1]} : vector<16x32xbf16> to vector<16x8xbf16>
    %42 = vector.extract_strided_slice %34 {offsets = [0, 8], sizes = [16, 8], strides = [1, 1]} : vector<16x32xbf16> to vector<16x8xbf16>
    %cst_17 = arith.constant dense<0.000000e+00> : vector<16x16xf32>
    %43 = tpu.matmul %41, %42, %cst_17 {dimension_numbers = #tpu.dot_dimension_numbers<[1], [1], [0], [0], [0, 0, 1, 0], [], []>} : vector<16x8xbf16>, vector<16x8xbf16>, vector<16x16xf32> -> vector<16x16xf32>
    %44 = arith.addf %43, %5 : vector<16x16xf32>
    %cst_18 = arith.constant dense<0xFF800000> : vector<16xf32>
    %45 = vector.multi_reduction <maximumf>, %40, %cst_18 [1] : vector<16x16xf32> to vector<16xf32>
    %46 = vector.shape_cast %45 : vector<16xf32> to vector<16x1xf32>
    %47 = vector.broadcast %46 : vector<16x1xf32> to vector<16x16xf32>
    %48 = arith.subf %40, %47 : vector<16x16xf32>
    %49 = math.exp %48 : vector<16x16xf32>
    %cst_19 = arith.constant dense<0.000000e+00> : vector<16xf32>
    %50 = vector.multi_reduction <add>, %49, %cst_19 [1] : vector<16x16xf32> to vector<16xf32>
    %51 = vector.shape_cast %50 : vector<16xf32> to vector<16x1xf32>
    %52 = tpu.reciprocal %51 {approx = true} : vector<16x1xf32> -> vector<16x1xf32>
    %53 = vector.broadcast %52 : vector<16x1xf32> to vector<16x16xf32>
    %54 = arith.mulf %49, %53 : vector<16x16xf32>
    %cst_20 = arith.constant dense<0xFF800000> : vector<16xf32>
    %55 = vector.multi_reduction <maximumf>, %44, %cst_20 [1] : vector<16x16xf32> to vector<16xf32>
    %56 = vector.shape_cast %55 : vector<16xf32> to vector<16x1xf32>
    %57 = vector.broadcast %56 : vector<16x1xf32> to vector<16x16xf32>
    %58 = arith.subf %44, %57 : vector<16x16xf32>
    %59 = math.exp %58 : vector<16x16xf32>
    %cst_21 = arith.constant dense<0.000000e+00> : vector<16xf32>
    %60 = vector.multi_reduction <add>, %59, %cst_21 [1] : vector<16x16xf32> to vector<16xf32>
    %61 = vector.shape_cast %60 : vector<16xf32> to vector<16x1xf32>
    %62 = tpu.reciprocal %61 {approx = true} : vector<16x1xf32> -> vector<16x1xf32>
    %63 = vector.broadcast %62 : vector<16x1xf32> to vector<16x16xf32>
    %64 = arith.mulf %59, %63 : vector<16x16xf32>
    %65 = vector.broadcast %0 : f32 to vector<16x16xf32>
    %66 = arith.mulf %65, %64 : vector<16x16xf32>
    %67 = arith.subf %54, %66 : vector<16x16xf32>
    %68 = arith.truncf %67 : vector<16x16xf32> to vector<16x16xbf16>
    %69 = vector.extract_strided_slice %36 {offsets = [0, 0], sizes = [16, 16], strides = [1, 1]} : vector<16x32xbf16> to vector<16x16xbf16>
    %cst_22 = arith.constant dense<0.000000e+00> : vector<16x16xf32>
    %70 = tpu.matmul %68, %69, %cst_22 {dimension_numbers = #tpu.dot_dimension_numbers<[1], [0], [0], [1], [0, 0, 1, 1], [], []>} : vector<16x16xbf16>, vector<16x16xbf16>, vector<16x16xf32> -> vector<16x16xf32>
    %71 = arith.mulf %70, %70 : vector<16x16xf32>
    %cst_23 = arith.constant dense<0.000000e+00> : vector<16xf32>
    %72 = vector.multi_reduction <add>, %71, %cst_23 [1] : vector<16x16xf32> to vector<16xf32>
    %73 = vector.shape_cast %72 : vector<16xf32> to vector<16x1xf32>
    %cst_24 = arith.constant 1.600000e+01 : f32
    %74 = vector.broadcast %cst_24 : f32 to vector<16x1xf32>
    %75 = arith.divf %73, %74 : vector<16x1xf32>
    %cst_25 = arith.constant 9.99999974E-6 : f32
    %76 = vector.broadcast %cst_25 : f32 to vector<16x1xf32>
    %77 = arith.addf %75, %76 : vector<16x1xf32>
    %78 = math.rsqrt %77 : vector<16x1xf32>
    %79 = vector.broadcast %78 : vector<16x1xf32> to vector<16x16xf32>
    %80 = arith.mulf %70, %79 : vector<16x16xf32>
    %81 = vector.broadcast %4 : vector<1x16xf32> to vector<16x16xf32>
    %82 = arith.mulf %80, %81 : vector<16x16xf32>
    %83 = vector.extract_strided_slice %28 {offsets = [0, 16], sizes = [16, 8], strides = [1, 1]} : vector<16x32xbf16> to vector<16x8xbf16>
    %84 = vector.extract_strided_slice %34 {offsets = [0, 16], sizes = [16, 8], strides = [1, 1]} : vector<16x32xbf16> to vector<16x8xbf16>
    %cst_26 = arith.constant dense<0.000000e+00> : vector<16x16xf32>
    %85 = tpu.matmul %83, %84, %cst_26 {dimension_numbers = #tpu.dot_dimension_numbers<[1], [1], [0], [0], [0, 0, 1, 0], [], []>} : vector<16x8xbf16>, vector<16x8xbf16>, vector<16x16xf32> -> vector<16x16xf32>
    %86 = arith.addf %85, %5 : vector<16x16xf32>
    %87 = vector.extract_strided_slice %28 {offsets = [0, 24], sizes = [16, 8], strides = [1, 1]} : vector<16x32xbf16> to vector<16x8xbf16>
    %88 = vector.extract_strided_slice %34 {offsets = [0, 24], sizes = [16, 8], strides = [1, 1]} : vector<16x32xbf16> to vector<16x8xbf16>
    %cst_27 = arith.constant dense<0.000000e+00> : vector<16x16xf32>
    %89 = tpu.matmul %87, %88, %cst_27 {dimension_numbers = #tpu.dot_dimension_numbers<[1], [1], [0], [0], [0, 0, 1, 0], [], []>} : vector<16x8xbf16>, vector<16x8xbf16>, vector<16x16xf32> -> vector<16x16xf32>
    %90 = arith.addf %89, %5 : vector<16x16xf32>
    %cst_28 = arith.constant dense<0xFF800000> : vector<16xf32>
    %91 = vector.multi_reduction <maximumf>, %86, %cst_28 [1] : vector<16x16xf32> to vector<16xf32>
    %92 = vector.shape_cast %91 : vector<16xf32> to vector<16x1xf32>
    %93 = vector.broadcast %92 : vector<16x1xf32> to vector<16x16xf32>
    %94 = arith.subf %86, %93 : vector<16x16xf32>
    %95 = math.exp %94 : vector<16x16xf32>
    %cst_29 = arith.constant dense<0.000000e+00> : vector<16xf32>
    %96 = vector.multi_reduction <add>, %95, %cst_29 [1] : vector<16x16xf32> to vector<16xf32>
    %97 = vector.shape_cast %96 : vector<16xf32> to vector<16x1xf32>
    %98 = tpu.reciprocal %97 {approx = true} : vector<16x1xf32> -> vector<16x1xf32>
    %99 = vector.broadcast %98 : vector<16x1xf32> to vector<16x16xf32>
    %100 = arith.mulf %95, %99 : vector<16x16xf32>
    %cst_30 = arith.constant dense<0xFF800000> : vector<16xf32>
    %101 = vector.multi_reduction <maximumf>, %90, %cst_30 [1] : vector<16x16xf32> to vector<16xf32>
    %102 = vector.shape_cast %101 : vector<16xf32> to vector<16x1xf32>
    %103 = vector.broadcast %102 : vector<16x1xf32> to vector<16x16xf32>
    %104 = arith.subf %90, %103 : vector<16x16xf32>
    %105 = math.exp %104 : vector<16x16xf32>
    %cst_31 = arith.constant dense<0.000000e+00> : vector<16xf32>
    %106 = vector.multi_reduction <add>, %105, %cst_31 [1] : vector<16x16xf32> to vector<16xf32>
    %107 = vector.shape_cast %106 : vector<16xf32> to vector<16x1xf32>
    %108 = tpu.reciprocal %107 {approx = true} : vector<16x1xf32> -> vector<16x1xf32>
    %109 = vector.broadcast %108 : vector<16x1xf32> to vector<16x16xf32>
    %110 = arith.mulf %105, %109 : vector<16x16xf32>
    %111 = vector.broadcast %0 : f32 to vector<16x16xf32>
    %112 = arith.mulf %111, %110 : vector<16x16xf32>
    %113 = arith.subf %100, %112 : vector<16x16xf32>
    %114 = arith.truncf %113 : vector<16x16xf32> to vector<16x16xbf16>
    %115 = vector.extract_strided_slice %36 {offsets = [0, 16], sizes = [16, 16], strides = [1, 1]} : vector<16x32xbf16> to vector<16x16xbf16>
    %cst_32 = arith.constant dense<0.000000e+00> : vector<16x16xf32>
    %116 = tpu.matmul %114, %115, %cst_32 {dimension_numbers = #tpu.dot_dimension_numbers<[1], [0], [0], [1], [0, 0, 1, 1], [], []>} : vector<16x16xbf16>, vector<16x16xbf16>, vector<16x16xf32> -> vector<16x16xf32>
    %117 = arith.mulf %116, %116 : vector<16x16xf32>
    %cst_33 = arith.constant dense<0.000000e+00> : vector<16xf32>
    %118 = vector.multi_reduction <add>, %117, %cst_33 [1] : vector<16x16xf32> to vector<16xf32>
    %119 = vector.shape_cast %118 : vector<16xf32> to vector<16x1xf32>
    %cst_34 = arith.constant 1.600000e+01 : f32
    %120 = vector.broadcast %cst_34 : f32 to vector<16x1xf32>
    %121 = arith.divf %119, %120 : vector<16x1xf32>
    %cst_35 = arith.constant 9.99999974E-6 : f32
    %122 = vector.broadcast %cst_35 : f32 to vector<16x1xf32>
    %123 = arith.addf %121, %122 : vector<16x1xf32>
    %124 = math.rsqrt %123 : vector<16x1xf32>
    %125 = vector.broadcast %124 : vector<16x1xf32> to vector<16x16xf32>
    %126 = arith.mulf %116, %125 : vector<16x16xf32>
    %127 = vector.broadcast %4 : vector<1x16xf32> to vector<16x16xf32>
    %128 = arith.mulf %126, %127 : vector<16x16xf32>
    %129 = tpu.concatenate %82, %128 in 1 : vector<16x16xf32>, vector<16x16xf32> -> vector<16x32xf32>
    %130 = arith.truncf %129 : vector<16x32xf32> to vector<16x32xbf16>
    %c0_36 = arith.constant 0 : index
    %c0_37 = arith.constant 0 : index
    %131 = vector.load %arg3[%c0_36, %c0_37] : memref<32x32xbf16, #tpu.memory_space<vmem>>, vector<32x32xbf16>
    %cst_38 = arith.constant dense<0.000000e+00> : vector<16x32xf32>
    %132 = tpu.matmul %130, %131, %cst_38 {dimension_numbers = #tpu.dot_dimension_numbers<[1], [0], [0], [1], [0, 0, 1, 1], [], []>} : vector<16x32xbf16>, vector<32x32xbf16>, vector<16x32xf32> -> vector<16x32xf32>
    %133 = arith.addf %1, %132 : vector<16x32xf32>
    %134 = arith.mulf %133, %133 : vector<16x32xf32>
    %cst_39 = arith.constant dense<0.000000e+00> : vector<16xf32>
    %135 = vector.multi_reduction <add>, %134, %cst_39 [1] : vector<16x32xf32> to vector<16xf32>
    %136 = vector.shape_cast %135 : vector<16xf32> to vector<16x1xf32>
    %cst_40 = arith.constant 3.200000e+01 : f32
    %137 = vector.broadcast %cst_40 : f32 to vector<16x1xf32>
    %138 = arith.divf %136, %137 : vector<16x1xf32>
    %cst_41 = arith.constant 9.99999974E-6 : f32
    %139 = vector.broadcast %cst_41 : f32 to vector<16x1xf32>
    %140 = arith.addf %138, %139 : vector<16x1xf32>
    %141 = math.rsqrt %140 : vector<16x1xf32>
    %142 = vector.broadcast %141 : vector<16x1xf32> to vector<16x32xf32>
    %143 = arith.mulf %133, %142 : vector<16x32xf32>
    %144 = vector.broadcast %3 : vector<1x32xf32> to vector<16x32xf32>
    %145 = arith.mulf %143, %144 : vector<16x32xf32>
    %146 = arith.truncf %145 : vector<16x32xf32> to vector<16x32xbf16>
    %c0_42 = arith.constant 0 : index
    %c0_43 = arith.constant 0 : index
    %147 = vector.load %arg4[%c0_42, %c0_43] : memref<32x192xbf16, #tpu.memory_space<vmem>>, vector<32x192xbf16>
    %cst_44 = arith.constant dense<0.000000e+00> : vector<16x192xf32>
    %148 = tpu.matmul %146, %147, %cst_44 {dimension_numbers = #tpu.dot_dimension_numbers<[1], [0], [0], [1], [0, 0, 1, 1], [], []>} : vector<16x32xbf16>, vector<32x192xbf16>, vector<16x192xf32> -> vector<16x192xf32>
    %149 = vector.extract_strided_slice %148 {offsets = [0, 0], sizes = [16, 96], strides = [1, 1]} : vector<16x192xf32> to vector<16x96xf32>
    %150 = vector.extract_strided_slice %148 {offsets = [0, 96], sizes = [16, 96], strides = [1, 1]} : vector<16x192xf32> to vector<16x96xf32>
    %cst_45 = arith.constant 0.000000e+00 : f32
    %151 = vector.broadcast %cst_45 : f32 to vector<16x96xf32>
    %152 = arith.subf %151, %149 : vector<16x96xf32>
    %cst_46 = arith.constant 6.000000e+01 : f32
    %153 = vector.broadcast %cst_46 : f32 to vector<16x96xf32>
    %154 = arith.minimumf %152, %153 : vector<16x96xf32>
    %155 = math.exp %154 : vector<16x96xf32>
    %cst_47 = arith.constant 1.000000e+00 : f32
    %156 = vector.broadcast %cst_47 : f32 to vector<16x96xf32>
    %157 = arith.addf %156, %155 : vector<16x96xf32>
    %158 = tpu.reciprocal %157 {approx = true} : vector<16x96xf32> -> vector<16x96xf32>
    %159 = arith.mulf %149, %158 : vector<16x96xf32>
    %160 = arith.mulf %159, %150 : vector<16x96xf32>
    %161 = arith.truncf %160 : vector<16x96xf32> to vector<16x96xbf16>
    %c0_48 = arith.constant 0 : index
    %c0_49 = arith.constant 0 : index
    %162 = vector.load %arg5[%c0_48, %c0_49] : memref<96x32xbf16, #tpu.memory_space<vmem>>, vector<96x32xbf16>
    %cst_50 = arith.constant dense<0.000000e+00> : vector<16x32xf32>
    %163 = tpu.matmul %161, %162, %cst_50 {dimension_numbers = #tpu.dot_dimension_numbers<[1], [0], [0], [1], [0, 0, 1, 1], [], []>} : vector<16x96xbf16>, vector<96x32xbf16>, vector<16x32xf32> -> vector<16x32xf32>
    %164 = arith.addf %133, %163 : vector<16x32xf32>
    %c0_51 = arith.constant 0 : index
    %c0_52 = arith.constant 0 : index
    %165 = vector.load %arg9[%c0_51, %c0_52] : memref<16x32xf32, #tpu.memory_space<vmem>>, vector<16x32xf32>
    tpu.vector_store %arg9[%c0_51, %c0_52], %164 {strides = array<i32>} : memref<16x32xf32, #tpu.memory_space<vmem>>, vector<16x32xf32>,
    return
  }
}

</mosaic_0001>

<llo_original>
// kernel: _forward.1
$region0: #{_forward.1}
  #allocation0 [shape = 'u32[]', space=smem, size = 0x4, offset = 0x4, fixed_abs, tag = 'smem constant byte address 0x4 - core index']
  #allocation1 [shape = 'u32[144,128]{1,0:T(1,128)}', space=vmem, size = 0x12000, scoped, tag = 'internal scratch']
  #allocation2 [shape = 'f32[1]{0:T(128)S(6)}', space=smem, size = 0x200, scoped, tag = 'scoped memory for _forward.1']
  %s0 = inlined_call_operand.<no memory space> [shape: f32[1], index: 0, kind: input, shape index: {}]
  %s1 = inlined_call_operand.hbm [shape: f32[16,32], index: 1, kind: input, shape index: {}]
  %s2 = inlined_call_operand.vmem [shape: bf16[32,160], index: 2, kind: input, shape index: {}]
  %s3 = inlined_call_operand.hbm [shape: bf16[32,32], index: 3, kind: input, shape index: {}]
  %s4 = inlined_call_operand.vmem [shape: bf16[32,192], index: 4, kind: input, shape index: {}]
  %s5 = inlined_call_operand.vmem [shape: bf16[96,32], index: 5, kind: input, shape index: {}]
  %s6 = inlined_call_operand.hbm [shape: f32[3,32], index: 6, kind: input, shape index: {}]
  %s7 = inlined_call_operand.hbm [shape: f32[16,64], index: 7, kind: input, shape index: {}]
  %s8 = inlined_call_operand.vmem [shape: f32[16,16], index: 8, kind: input, shape index: {}]
  %s9 = inlined_call_operand.hbm [shape: f32[16,32], index: 9, kind: output, shape index: {}]
  %s10 = sld [smem:[#allocation0]]
  $region62: #{_forward.1} parent=0
    _
  %s12 = ssub.s32 1, %s10
  %s13 = scalar_select 0, %s12, %s10
  %14 = sst [smem:[#allocation2]] %s0
  $region1: #{_forward.1} parent=0
    #allocation3 [shape = 'u8[8192]{0}', space=vmem, size = 0x2000, scoped, tag = 'input window, operand 1, single buffered']
    #allocation4 [shape = 's32[1]{0}', space=sflag, size = 0x4, scoped, tag = 'scoped memory for _forward.1']
    #allocation5 [shape = 's32[1]{0}', space=sflag, size = 0x4, scoped, tag = 'scoped memory for _forward.1']
    #allocation6 [shape = 'u8[8192]{0}', space=vmem, size = 0x2000, scoped, tag = 'input window, operand 3, single buffered']
    #allocation7 [shape = 's32[1]{0}', space=sflag, size = 0x4, scoped, tag = 'scoped memory for _forward.1']
    #allocation8 [shape = 'u8[2048]{0}', space=vmem, size = 0x800, scoped, tag = 'input window, operand 6, single buffered']
    #allocation9 [shape = 'u8[8192]{0}', space=vmem, size = 0x2000, scoped, tag = 'input window, operand 7, single buffered']
    #allocation10 [shape = 's32[1]{0}', space=sflag, size = 0x4, scoped, tag = 'scoped memory for _forward.1']
    #allocation11 [shape = 'u8[8192]{0}', space=vmem, size = 0x2000, scoped, tag = 'output window, operand 0, single buffered']
    %15 = vsyncpa [#allocation4], 0
    %16 = vsyncpa [#allocation7], 0
    %17 = vsyncpa [#allocation10], 0
    %18 = vsyncpa [#allocation5], 0
    // Predicated region
    $region2: #{_forward.1} parent=1 // pred_check
      _
    $region3: #{_forward.1} parent=1 // pred_check_branch
      %20 = sbr.rel (0) target = $region5
    $region4: #{_forward.1} parent=1 // pred_region
      _
    $region5: #{_forward.1} parent=1 // pred_fallthru
      _
    // Predicated region
    $region6: #{_forward.1} parent=1 // pred_check
      _
    $region7: #{_forward.1} parent=1 // pred_check_branch
      %22 = sbr.rel (0) target = $region9
    $region8: #{_forward.1} parent=1 // pred_region
      %s24 = ssub.s32 256, 256
      %25 = vsyncadd [#allocation4], %s24
      %s26 = sshll.u32 [#allocation3], 4
      %s27 = int_to_ptr.vmem [resolvable:$true] %s26
      %32 = dma.hbm_to_vmem [thread:$0]  %s1, 256, %s27, [#allocation4], 128, 128, 8
    $region9: #{_forward.1} parent=1 // pred_fallthru
      _
    // Predicated region
    $region10: #{_forward.1} parent=1 // pred_check
      _
    $region11: #{_forward.1} parent=1 // pred_check_branch
      %34 = sbr.rel (0) target = $region13
    $region12: #{_forward.1} parent=1 // pred_region
      _
    $region13: #{_forward.1} parent=1 // pred_fallthru
      _
    // Predicated region
    $region14: #{_forward.1} parent=1 // pred_check
      _
    $region15: #{_forward.1} parent=1 // pred_check_branch
      %36 = sbr.rel (0) target = $region17
    $region16: #{_forward.1} parent=1 // pred_region
      %s38 = ssub.s32 256, 256
      %39 = vsyncadd [#allocation7], %s38
      %s40 = sshll.u32 [#allocation6], 4
      %s41 = int_to_ptr.vmem [resolvable:$true] %s40
      %46 = dma.hbm_to_vmem [thread:$0]  %s3, 256, %s41, [#allocation7], 64, 64, 4
    $region17: #{_forward.1} parent=1 // pred_fallthru
      _
    // Predicated region
    $region18: #{_forward.1} parent=1 // pred_check
      _
    $region19: #{_forward.1} parent=1 // pred_check_branch
      %48 = sbr.rel (0) target = $region21
    $region20: #{_forward.1} parent=1 // pred_region
      _
    $region21: #{_forward.1} parent=1 // pred_fallthru
      _
    // Predicated region
    $region22: #{_forward.1} parent=1 // pred_check
      _
    $region23: #{_forward.1} parent=1 // pred_check_branch
      %50 = sbr.rel (0) target = $region25
    $region24: #{_forward.1} parent=1 // pred_region
      _
    $region25: #{_forward.1} parent=1 // pred_fallthru
      _
    // Predicated region
    $region26: #{_forward.1} parent=1 // pred_check
      _
    $region27: #{_forward.1} parent=1 // pred_check_branch
      %52 = sbr.rel (0) target = $region29
    $region28: #{_forward.1} parent=1 // pred_region
      %s54 = ssub.s32 64, 64
      %55 = vsyncadd [#allocation7], %s54
      %s57 = sshll.u32 [#allocation8], 4
      %s58 = int_to_ptr.vmem [resolvable:$true] %s57
      %60 = dma.hbm_to_vmem [thread:$0]  %s6, 64, %s58, [#allocation7]
    $region29: #{_forward.1} parent=1 // pred_fallthru
      _
    // Predicated region
    $region30: #{_forward.1} parent=1 // pred_check
      _
    $region31: #{_forward.1} parent=1 // pred_check_branch
      %62 = sbr.rel (0) target = $region33
    $region32: #{_forward.1} parent=1 // pred_region
      %s64 = ssub.s32 256, 256
      %65 = vsyncadd [#allocation10], %s64
      %s66 = sshll.u32 [#allocation9], 4
      %s67 = int_to_ptr.vmem [resolvable:$true] %s66
      %72 = dma.hbm_to_vmem [thread:$0]  %s7, 256, %s67, [#allocation10], 128, 128, 8
    $region33: #{_forward.1} parent=1 // pred_fallthru
      _
    // Predicated region
    $region34: #{_forward.1} parent=1 // pred_check
      _
    $region35: #{_forward.1} parent=1 // pred_check_branch
      %74 = sbr.rel (0) target = $region37
    $region36: #{_forward.1} parent=1 // pred_region
      _
    $region37: #{_forward.1} parent=1 // pred_fallthru
      _
    // Predicated region
    $region38: #{_forward.1} parent=1 // pred_check
      _
    $region39: #{_forward.1} parent=1 // pred_check_branch
      %76 = sbr.rel (0) target = $region41
    $region40: #{_forward.1} parent=1 // pred_region
      %77 = dma.done [#allocation4], 256
    $region41: #{_forward.1} parent=1 // pred_fallthru
      _
    // Predicated region
    $region42: #{_forward.1} parent=1 // pred_check
      _
    $region43: #{_forward.1} parent=1 // pred_check_branch
      %79 = sbr.rel (0) target = $region45
    $region44: #{_forward.1} parent=1 // pred_region
      %80 = dma.done [#allocation7], 256
    $region45: #{_forward.1} parent=1 // pred_fallthru
      _
    // Predicated region
    $region46: #{_forward.1} parent=1 // pred_check
      _
    $region47: #{_forward.1} parent=1 // pred_check_branch
      %82 = sbr.rel (0) target = $region49
    $region48: #{_forward.1} parent=1 // pred_region
      %83 = dma.done [#allocation7], 64
    $region49: #{_forward.1} parent=1 // pred_fallthru
      _
    // Predicated region
    $region50: #{_forward.1} parent=1 // pred_check
      _
    $region51: #{_forward.1} parent=1 // pred_check_branch
      %85 = sbr.rel (0) target = $region53
    $region52: #{_forward.1} parent=1 // pred_region
      %86 = dma.done [#allocation10], 256
    $region53: #{_forward.1} parent=1 // pred_fallthru
      _
    %s88 = sld [smem:[#allocation2]]
    %v89 = vld [vmem:[#allocation3] sm:$0xff]
    %v90 = vld [vmem:[#allocation3 + $0x8] sm:$0xff]
    %v91 = vld [vmem:[#allocation8] sm:$0x1]
    %v92 = vld [vmem:[#allocation8 + $0x1] sm:$0x1]
    %v93 = vld [vmem:[#allocation8 + $0x2] sm:$0x1]
    %v94 = vld [vmem:[%s8] sm:$0xff]
    %v95 = vld [vmem:[%s8 + $0x8] sm:$0xff]
    %v96 = vld [vmem:[#allocation9] sm:$0xff]
    %v97 = vld [vmem:[#allocation9 + $0x8] sm:$0xff]
    %v98 = vmul.f32 %v89, %v89
    %v99 = vmul.f32 %v90, %v90
    %vm100 = vcmask 261120
    %v101 = vsel %vm100, %v98, 0.0
    %102 = vadd.xlane.f32.xlu0 %v101
    %v103 = vpop.xlane.xlu0 %102
    %v104 = vsel %vm100, %v99, 0.0
    %105 = vadd.xlane.f32.xlu0 %v104
    %v106 = vpop.xlane.xlu0 %105
    %v107 = vrcp.pop 32.0
    %v108 = vmul.f32 %v103, %v107
    %v109 = vmul.f32 %v106, %v107
    %v110 = vadd.f32 %v108, 1e-05
    %v111 = vadd.f32 %v109, 1e-05
    %v112 = vrsqrt.pop %v110
    %v113 = vrsqrt.pop %v111
    %v114 = vmul.f32 %v89, %v112
    %v115 = vmul.f32 %v90, %v113
    %v116 = vlaneseq
    %v117 = vshrl.u32 %v116, 7
    %v118 = vsub.s32 0, %v117
    %v119 = vrot.slane %v91, %v118
    %v120 = vmul.f32 %v114, %v119
    %v121 = vmul.f32 %v115, %v119
    %v122 = vpack.c.bf16 %v121, %v120
    %v123 = vld [vmem:[%s2] sm:$0xff]
    %v124 = vld [vmem:[%s2 + $0x8] sm:$0xff]
    %v125 = vld [vmem:[%s2 + $0x10] sm:$0xff]
    %v126 = vld [vmem:[%s2 + $0x18] sm:$0xff]
    %v131 = vunpack.c.l.b16 %v123
    %v132 = vunpack.c.h.b16 %v123
    %v133 = vunpack.c.l.b16 %v124
    %v134 = vunpack.c.h.b16 %v124
    %v135 = vunpack.c.l.b16 %v125
    %v136 = vunpack.c.h.b16 %v125
    %v137 = vunpack.c.l.b16 %v126
    %v138 = vunpack.c.h.b16 %v126
    %v139 = vpack.c.b16 %v133, %v131
    %v140 = vpack.c.b16 %v134, %v132
    %v141 = vpack.c.b16 %v137, %v135
    %v142 = vpack.c.b16 %v138, %v136
    %v148 = vsel %vm100, %v122, 0
    %150 = vmatprep.subr.bf16.mxu0 0
    %151 = vmatpush1.bf16.msra.mxu0 0
    %152 = vmatprep.subr.bf16.mxu0 0
    %153 = vmatpush1.bf16.msra.mxu0 0
    %154 = vmatprep.subr.bf16.mxu0 0
    %155 = vmatpush1.bf16.msra.mxu0 0
    %156 = vmatprep.subr.bf16.mxu0 0
    %157 = vmatpush1.bf16.msra.mxu0 0
    %158 = vmatprep.subr.bf16.mxu0 0
    %159 = vmatpush1.bf16.msra.mxu0 0
    %160 = vmatprep.subr.bf16.mxu0 0
    %161 = vmatpush1.bf16.msra.mxu0 0
    %162 = vmatprep.subr.bf16.mxu0 %v142
    %163 = vmatpush1.bf16.msra.mxu0 %v141
    %164 = vmatprep.subr.bf16.mxu0 %v140
    %165 = vmatpush1.bf16.msra.mxu0 %v139
    %166 = vmatprep.subr.bf16.mxu0 0
    %167 = vmatpush2.bf16.msra.mxu0 0
    %168 = vmatprep.subr.bf16.mxu0 0
    %169 = vmatpush2.bf16.msra.mxu0 0
    %170 = vmatprep.subr.bf16.mxu0 0
    %171 = vmatpush2.bf16.msra.mxu0 0
    %172 = vmatprep.subr.bf16.mxu0 0
    %173 = vmatpush2.bf16.msra.mxu0 0
    %174 = vmatprep.subr.bf16.mxu0 0
    %175 = vmatpush2.bf16.msra.mxu0 0
    %176 = vmatprep.subr.bf16.mxu0 0
    %177 = vmatpush2.bf16.msra.mxu0 0
    %178 = vmatprep.subr.bf16.mxu0 0
    %179 = vmatpush2.bf16.msra.mxu0 0
    %180 = vmatprep.subr.bf16.mxu0 0
    %181 = vmatpush2.bf16.msra.mxu0 0
    %182 = vmatprep.mubr.bf16.mxu0 0
    %183 = vmatmul.mubr.bf16.gmra.mxu0 %v148
    %v184 = vpop.f32.mrf.mxu0
    %v185 = vadd.f32 0.0, %v184
    %v186 = vpop.f32.mrf.mxu0
    %v187 = vadd.f32 0.0, %v186
    %v188 = vpop.f32.mrf.mxu0
    %v189 = vadd.f32 0.0, %v188
    %v190 = vpop.f32.mrf.mxu0
    %v191 = vadd.f32 0.0, %v190
    %192 = vdwg.mxu0
    %v193 = vmul.f32 %v185, %v96
    %v194 = vmul.f32 %v189, %v97
    %197 = vrot.lane.b32.xlu0 %v193, 96
    %v198 = vpop.permute.xlu0 %197
    %199 = vrot.lane.b32.xlu0 %v194, 96
    %v200 = vpop.permute.xlu0 %199
    %v203 = vadd.f32 %v193, %v198
    %v204 = vadd.f32 %v194, %v200
    %v205 = vpack.c.bf16 %v204, %v203
    %208 = vrot.lane.b32.xlu0 %v96, 64
    %v209 = vpop.permute.xlu0 %208
    %210 = vrot.lane.b32.xlu0 %v97, 64
    %v211 = vpop.permute.xlu0 %210
    %v214 = vmul.f32 %v185, %v209
    %v215 = vmul.f32 %v189, %v211
    %218 = vrot.lane.b32.xlu0 %v214, 96
    %v219 = vpop.permute.xlu0 %218
    %220 = vrot.lane.b32.xlu0 %v215, 96
    %v221 = vpop.permute.xlu0 %220
    %v224 = vadd.f32 %v214, %v219
    %v225 = vadd.f32 %v215, %v221
    %v226 = vpack.c.bf16 %v225, %v224
    %v227 = vpack.c.bf16 %v191, %v187
    %229 = vrot.lane.b32.xlu0 %v226, 64
    %v230 = vpop.permute.xlu0 %229
    %vm231 = vcmask 64512
    %v233 = vsel %vm231, %v205, 0
    %v236 = vsel %vm231, %v230, 0
    %238 = vmatprep.subr.bf16.mxu0 0
    %239 = vmatpush1.bf16.xpose.msra.mxu0 0
    %240 = vmatprep.subr.bf16.mxu0 0
    %241 = vmatpush1.bf16.xpose.msra.mxu0 0
    %242 = vmatprep.subr.bf16.mxu0 0
    %243 = vmatpush1.bf16.xpose.msra.mxu0 0
    %244 = vmatprep.subr.bf16.mxu0 0
    %245 = vmatpush1.bf16.xpose.msra.mxu0 0
    %246 = vmatprep.subr.bf16.mxu0 0
    %247 = vmatpush1.bf16.xpose.msra.mxu0 0
    %248 = vmatprep.subr.bf16.mxu0 0
    %249 = vmatpush1.bf16.xpose.msra.mxu0 0
    %250 = vmatprep.subr.bf16.mxu0 0
    %251 = vmatpush1.bf16.xpose.msra.mxu0 0
    %252 = vmatprep.subr.bf16.mxu0 0
    %253 = vmatpush1.bf16.xpose.msra.mxu0 %v236
    %254 = vmatprep.subr.bf16.mxu0 0
    %255 = vmatpush2.bf16.xpose.msra.mxu0 0
    %256 = vmatprep.subr.bf16.mxu0 0
    %257 = vmatpush2.bf16.xpose.msra.mxu0 0
    %258 = vmatprep.subr.bf16.mxu0 0
    %259 = vmatpush2.bf16.xpose.msra.mxu0 0
    %260 = vmatprep.subr.bf16.mxu0 0
    %261 = vmatpush2.bf16.xpose.msra.mxu0 0
    %262 = vmatprep.subr.bf16.mxu0 0
    %263 = vmatpush2.bf16.xpose.msra.mxu0 0
    %264 = vmatprep.subr.bf16.mxu0 0
    %265 = vmatpush2.bf16.xpose.msra.mxu0 0
    %266 = vmatprep.subr.bf16.mxu0 0
    %267 = vmatpush2.bf16.xpose.msra.mxu0 0
    %268 = vmatprep.subr.bf16.mxu0 0
    %269 = vmatpush2.bf16.xpose.msra.mxu0 0
    %270 = vmatprep.mubr.bf16.mxu0 0
    %271 = vmatmul.mubr.bf16.gmra.mxu0 %v233
    %v272 = vpop.f32.mrf.mxu0
    %v273 = vadd.f32 %v94, %v272
    %v274 = vpop.f32.mrf.mxu0
    %v275 = vpop.f32.mrf.mxu0
    %v276 = vadd.f32 %v95, %v275
    %v277 = vpop.f32.mrf.mxu0
    %278 = vdwg.mxu0
    %280 = vrot.lane.b32.xlu0 %v205, 120
    %v281 = vpop.permute.xlu0 %280
    %282 = vrot.lane.b32.xlu0 %v226, 56
    %v283 = vpop.permute.xlu0 %282
    %v285 = vsel %vm231, %v281, 0
    %v288 = vsel %vm231, %v283, 0
    %290 = vmatprep.subr.bf16.mxu0 0
    %291 = vmatpush1.bf16.xpose.msra.mxu0 0
    %292 = vmatprep.subr.bf16.mxu0 0
    %293 = vmatpush1.bf16.xpose.msra.mxu0 0
    %294 = vmatprep.subr.bf16.mxu0 0
    %295 = vmatpush1.bf16.xpose.msra.mxu0 0
    %296 = vmatprep.subr.bf16.mxu0 0
    %297 = vmatpush1.bf16.xpose.msra.mxu0 0
    %298 = vmatprep.subr.bf16.mxu0 0
    %299 = vmatpush1.bf16.xpose.msra.mxu0 0
    %300 = vmatprep.subr.bf16.mxu0 0
    %301 = vmatpush1.bf16.xpose.msra.mxu0 0
    %302 = vmatprep.subr.bf16.mxu0 0
    %303 = vmatpush1.bf16.xpose.msra.mxu0 0
    %304 = vmatprep.subr.bf16.mxu0 0
    %305 = vmatpush1.bf16.xpose.msra.mxu0 %v288
    %306 = vmatprep.subr.bf16.mxu0 0
    %307 = vmatpush2.bf16.xpose.msra.mxu0 0
    %308 = vmatprep.subr.bf16.mxu0 0
    %309 = vmatpush2.bf16.xpose.msra.mxu0 0
    %310 = vmatprep.subr.bf16.mxu0 0
    %311 = vmatpush2.bf16.xpose.msra.mxu0 0
    %312 = vmatprep.subr.bf16.mxu0 0
    %313 = vmatpush2.bf16.xpose.msra.mxu0 0
    %314 = vmatprep.subr.bf16.mxu0 0
    %315 = vmatpush2.bf16.xpose.msra.mxu0 0
    %316 = vmatprep.subr.bf16.mxu0 0
    %317 = vmatpush2.bf16.xpose.msra.mxu0 0
    %318 = vmatprep.subr.bf16.mxu0 0
    %319 = vmatpush2.bf16.xpose.msra.mxu0 0
    %320 = vmatprep.subr.bf16.mxu0 0
    %321 = vmatpush2.bf16.xpose.msra.mxu0 0
    %322 = vmatprep.mubr.bf16.mxu0 0
    %323 = vmatmul.mubr.bf16.gmra.mxu0 %v285
    %v324 = vpop.f32.mrf.mxu0
    %v325 = vadd.f32 %v94, %v324
    %v326 = vpop.f32.mrf.mxu0
    %v327 = vpop.f32.mrf.mxu0
    %v328 = vadd.f32 %v95, %v327
    %v329 = vpop.f32.mrf.mxu0
    %330 = vdwg.mxu0
    %vm331 = vcmask 130048
    %v332 = vsel %vm331, %v273, -inf
    %333 = vmax.xlane.f32.xlu0 %v332
    %v334 = vpop.xlane.xlu0 %333
    %v335 = vsel %vm331, %v276, -inf
    %336 = vmax.xlane.f32.xlu0 %v335
    %v337 = vpop.xlane.xlu0 %336
    %v338 = vsub.f32 %v273, %v334
    %v339 = vsub.f32 %v276, %v337
    %v340 = vmul.f32 %v338, 1.442695
    %v341 = vpow.pop %v340
    %v342 = vmul.f32 %v339, 1.442695
    %v343 = vpow.pop %v342
    %v344 = vsel %vm331, %v341, 0.0
    %345 = vadd.xlane.f32.xlu0 %v344
    %v346 = vpop.xlane.xlu0 %345
    %v347 = vsel %vm331, %v343, 0.0
    %348 = vadd.xlane.f32.xlu0 %v347
    %v349 = vpop.xlane.xlu0 %348
    %v350 = vrcp.pop %v346
    %v351 = vrcp.pop %v349
    %v352 = vmul.f32 %v341, %v350
    %v353 = vmul.f32 %v343, %v351
    %v354 = vsel %vm331, %v325, -inf
    %355 = vmax.xlane.f32.xlu0 %v354
    %v356 = vpop.xlane.xlu0 %355
    %v357 = vsel %vm331, %v328, -inf
    %358 = vmax.xlane.f32.xlu0 %v357
    %v359 = vpop.xlane.xlu0 %358
    %v360 = vsub.f32 %v325, %v356
    %v361 = vsub.f32 %v328, %v359
    %v362 = vmul.f32 %v360, 1.442695
    %v363 = vpow.pop %v362
    %v364 = vmul.f32 %v361, 1.442695
    %v365 = vpow.pop %v364
    %v366 = vsel %vm331, %v363, 0.0
    %367 = vadd.xlane.f32.xlu0 %v366
    %v368 = vpop.xlane.xlu0 %367
    %v369 = vsel %vm331, %v365, 0.0
    %370 = vadd.xlane.f32.xlu0 %v369
    %v371 = vpop.xlane.xlu0 %370
    %v372 = vrcp.pop %v368
    %v373 = vrcp.pop %v371
    %v374 = vmul.f32 %v363, %v372
    %v375 = vmul.f32 %v365, %v373
    %v376 = vstv %s88
    %v377 = vmul.f32 %v376, %v374
    %v378 = vmul.f32 %v376, %v375
    %v379 = vsub.f32 %v352, %v377
    %v380 = vsub.f32 %v353, %v378
    %v381 = vpack.c.bf16 %v380, %v379
    %v383 = vsel %vm331, %v381, 0
    %385 = vmatprep.subr.bf16.mxu0 0
    %386 = vmatpush1.bf16.msra.mxu0 0
    %387 = vmatprep.subr.bf16.mxu0 0
    %388 = vmatpush1.bf16.msra.mxu0 0
    %389 = vmatprep.subr.bf16.mxu0 0
    %390 = vmatpush1.bf16.msra.mxu0 0
    %391 = vmatprep.subr.bf16.mxu0 0
    %392 = vmatpush1.bf16.msra.mxu0 0
    %393 = vmatprep.subr.bf16.mxu0 0
    %394 = vmatpush1.bf16.msra.mxu0 0
    %395 = vmatprep.subr.bf16.mxu0 0
    %396 = vmatpush1.bf16.msra.mxu0 0
    %397 = vmatprep.subr.bf16.mxu0 0
    %398 = vmatpush1.bf16.msra.mxu0 0
    %399 = vmatprep.subr.bf16.mxu0 0
    %400 = vmatpush1.bf16.msra.mxu0 %v227
    %401 = vmatprep.subr.bf16.mxu0 0
    %402 = vmatpush2.bf16.msra.mxu0 0
    %403 = vmatprep.subr.bf16.mxu0 0
    %404 = vmatpush2.bf16.msra.mxu0 0
    %405 = vmatprep.subr.bf16.mxu0 0
    %406 = vmatpush2.bf16.msra.mxu0 0
    %407 = vmatprep.subr.bf16.mxu0 0
    %408 = vmatpush2.bf16.msra.mxu0 0
    %409 = vmatprep.subr.bf16.mxu0 0
    %410 = vmatpush2.bf16.msra.mxu0 0
    %411 = vmatprep.subr.bf16.mxu0 0
    %412 = vmatpush2.bf16.msra.mxu0 0
    %413 = vmatprep.subr.bf16.mxu0 0
    %414 = vmatpush2.bf16.msra.mxu0 0
    %415 = vmatprep.subr.bf16.mxu0 0
    %416 = vmatpush2.bf16.msra.mxu0 0
    %417 = vmatprep.mubr.bf16.mxu0 0
    %418 = vmatmul.mubr.bf16.gmra.mxu0 %v383
    %v419 = vpop.f32.mrf.mxu0
    %v420 = vadd.f32 0.0, %v419
    %v421 = vpop.f32.mrf.mxu0
    %v422 = vpop.f32.mrf.mxu0
    %v423 = vadd.f32 0.0, %v422
    %v424 = vpop.f32.mrf.mxu0
    %425 = vdwg.mxu0
    %v426 = vmul.f32 %v420, %v420
    %v427 = vmul.f32 %v423, %v423
    %v428 = vsel %vm331, %v426, 0.0
    %429 = vadd.xlane.f32.xlu0 %v428
    %v430 = vpop.xlane.xlu0 %429
    %v431 = vsel %vm331, %v427, 0.0
    %432 = vadd.xlane.f32.xlu0 %v431
    %v433 = vpop.xlane.xlu0 %432
    %v434 = vrcp.pop 16.0
    %v435 = vmul.f32 %v430, %v434
    %v436 = vmul.f32 %v433, %v434
    %v437 = vadd.f32 %v435, 1e-05
    %v438 = vadd.f32 %v436, 1e-05
    %v439 = vrsqrt.pop %v437
    %v440 = vrsqrt.pop %v438
    %v441 = vmul.f32 %v420, %v439
    %v442 = vmul.f32 %v423, %v440
    %v443 = vlaneseq
    %v444 = vshrl.u32 %v443, 7
    %v445 = vsub.s32 0, %v444
    %v446 = vrot.slane %v93, %v445
    %v447 = vmul.f32 %v441, %v446
    %v448 = vmul.f32 %v442, %v446
    %449 = vrot.lane.b32.xlu0 %v205, 112
    %v450 = vpop.permute.xlu0 %449
    %451 = vrot.lane.b32.xlu0 %v226, 48
    %v452 = vpop.permute.xlu0 %451
    %v454 = vsel %vm231, %v450, 0
    %v457 = vsel %vm231, %v452, 0
    %459 = vmatprep.subr.bf16.mxu0 0
    %460 = vmatpush1.bf16.xpose.msra.mxu0 0
    %461 = vmatprep.subr.bf16.mxu0 0
    %462 = vmatpush1.bf16.xpose.msra.mxu0 0
    %463 = vmatprep.subr.bf16.mxu0 0
    %464 = vmatpush1.bf16.xpose.msra.mxu0 0
    %465 = vmatprep.subr.bf16.mxu0 0
    %466 = vmatpush1.bf16.xpose.msra.mxu0 0
    %467 = vmatprep.subr.bf16.mxu0 0
    %468 = vmatpush1.bf16.xpose.msra.mxu0 0
    %469 = vmatprep.subr.bf16.mxu0 0
    %470 = vmatpush1.bf16.xpose.msra.mxu0 0
    %471 = vmatprep.subr.bf16.mxu0 0
    %472 = vmatpush1.bf16.xpose.msra.mxu0 0
    %473 = vmatprep.subr.bf16.mxu0 0
    %474 = vmatpush1.bf16.xpose.msra.mxu0 %v457
    %475 = vmatprep.subr.bf16.mxu0 0
    %476 = vmatpush2.bf16.xpose.msra.mxu0 0
    %477 = vmatprep.subr.bf16.mxu0 0
    %478 = vmatpush2.bf16.xpose.msra.mxu0 0
    %479 = vmatprep.subr.bf16.mxu0 0
    %480 = vmatpush2.bf16.xpose.msra.mxu0 0
    %481 = vmatprep.subr.bf16.mxu0 0
    %482 = vmatpush2.bf16.xpose.msra.mxu0 0
    %483 = vmatprep.subr.bf16.mxu0 0
    %484 = vmatpush2.bf16.xpose.msra.mxu0 0
    %485 = vmatprep.subr.bf16.mxu0 0
    %486 = vmatpush2.bf16.xpose.msra.mxu0 0
    %487 = vmatprep.subr.bf16.mxu0 0
    %488 = vmatpush2.bf16.xpose.msra.mxu0 0
    %489 = vmatprep.subr.bf16.mxu0 0
    %490 = vmatpush2.bf16.xpose.msra.mxu0 0
    %491 = vmatprep.mubr.bf16.mxu0 0
    %492 = vmatmul.mubr.bf16.gmra.mxu0 %v454
    %v493 = vpop.f32.mrf.mxu0
    %v494 = vadd.f32 %v94, %v493
    %v495 = vpop.f32.mrf.mxu0
    %v496 = vpop.f32.mrf.mxu0
    %v497 = vadd.f32 %v95, %v496
    %v498 = vpop.f32.mrf.mxu0
    %499 = vdwg.mxu0
    %500 = vrot.lane.b32.xlu0 %v205, 104
    %v501 = vpop.permute.xlu0 %500
    %502 = vrot.lane.b32.xlu0 %v226, 40
    %v503 = vpop.permute.xlu0 %502
    %v505 = vsel %vm231, %v501, 0
    %v508 = vsel %vm231, %v503, 0
    %510 = vmatprep.subr.bf16.mxu0 0
    %511 = vmatpush1.bf16.xpose.msra.mxu0 0
    %512 = vmatprep.subr.bf16.mxu0 0
    %513 = vmatpush1.bf16.xpose.msra.mxu0 0
    %514 = vmatprep.subr.bf16.mxu0 0
    %515 = vmatpush1.bf16.xpose.msra.mxu0 0
    %516 = vmatprep.subr.bf16.mxu0 0
    %517 = vmatpush1.bf16.xpose.msra.mxu0 0
    %518 = vmatprep.subr.bf16.mxu0 0
    %519 = vmatpush1.bf16.xpose.msra.mxu0 0
    %520 = vmatprep.subr.bf16.mxu0 0
    %521 = vmatpush1.bf16.xpose.msra.mxu0 0
    %522 = vmatprep.subr.bf16.mxu0 0
    %523 = vmatpush1.bf16.xpose.msra.mxu0 0
    %524 = vmatprep.subr.bf16.mxu0 0
    %525 = vmatpush1.bf16.xpose.msra.mxu0 %v508
    %526 = vmatprep.subr.bf16.mxu0 0
    %527 = vmatpush2.bf16.xpose.msra.mxu0 0
    %528 = vmatprep.subr.bf16.mxu0 0
    %529 = vmatpush2.bf16.xpose.msra.mxu0 0
    %530 = vmatprep.subr.bf16.mxu0 0
    %531 = vmatpush2.bf16.xpose.msra.mxu0 0
    %532 = vmatprep.subr.bf16.mxu0 0
    %533 = vmatpush2.bf16.xpose.msra.mxu0 0
    %534 = vmatprep.subr.bf16.mxu0 0
    %535 = vmatpush2.bf16.xpose.msra.mxu0 0
    %536 = vmatprep.subr.bf16.mxu0 0
    %537 = vmatpush2.bf16.xpose.msra.mxu0 0
    %538 = vmatprep.subr.bf16.mxu0 0
    %539 = vmatpush2.bf16.xpose.msra.mxu0 0
    %540 = vmatprep.subr.bf16.mxu0 0
    %541 = vmatpush2.bf16.xpose.msra.mxu0 0
    %542 = vmatprep.mubr.bf16.mxu0 0
    %543 = vmatmul.mubr.bf16.gmra.mxu0 %v505
    %v544 = vpop.f32.mrf.mxu0
    %v545 = vadd.f32 %v94, %v544
    %v546 = vpop.f32.mrf.mxu0
    %v547 = vpop.f32.mrf.mxu0
    %v548 = vadd.f32 %v95, %v547
    %v549 = vpop.f32.mrf.mxu0
    %550 = vdwg.mxu0
    %v551 = vsel %vm331, %v494, -inf
    %552 = vmax.xlane.f32.xlu0 %v551
    %v553 = vpop.xlane.xlu0 %552
    %v554 = vsel %vm331, %v497, -inf
    %555 = vmax.xlane.f32.xlu0 %v554
    %v556 = vpop.xlane.xlu0 %555
    %v557 = vsub.f32 %v494, %v553
    %v558 = vsub.f32 %v497, %v556
    %v559 = vmul.f32 %v557, 1.442695
    %v560 = vpow.pop %v559
    %v561 = vmul.f32 %v558, 1.442695
    %v562 = vpow.pop %v561
    %v563 = vsel %vm331, %v560, 0.0
    %564 = vadd.xlane.f32.xlu0 %v563
    %v565 = vpop.xlane.xlu0 %564
    %v566 = vsel %vm331, %v562, 0.0
    %567 = vadd.xlane.f32.xlu0 %v566
    %v568 = vpop.xlane.xlu0 %567
    %v569 = vrcp.pop %v565
    %v570 = vrcp.pop %v568
    %v571 = vmul.f32 %v560, %v569
    %v572 = vmul.f32 %v562, %v570
    %v573 = vsel %vm331, %v545, -inf
    %574 = vmax.xlane.f32.xlu0 %v573
    %v575 = vpop.xlane.xlu0 %574
    %v576 = vsel %vm331, %v548, -inf
    %577 = vmax.xlane.f32.xlu0 %v576
    %v578 = vpop.xlane.xlu0 %577
    %v579 = vsub.f32 %v545, %v575
    %v580 = vsub.f32 %v548, %v578
    %v581 = vmul.f32 %v579, 1.442695
    %v582 = vpow.pop %v581
    %v583 = vmul.f32 %v580, 1.442695
    %v584 = vpow.pop %v583
    %v585 = vsel %vm331, %v582, 0.0
    %586 = vadd.xlane.f32.xlu0 %v585
    %v587 = vpop.xlane.xlu0 %586
    %v588 = vsel %vm331, %v584, 0.0
    %589 = vadd.xlane.f32.xlu0 %v588
    %v590 = vpop.xlane.xlu0 %589
    %v591 = vrcp.pop %v587
    %v592 = vrcp.pop %v590
    %v593 = vmul.f32 %v582, %v591
    %v594 = vmul.f32 %v584, %v592
    %v595 = vmul.f32 %v376, %v593
    %v596 = vmul.f32 %v376, %v594
    %v597 = vsub.f32 %v571, %v595
    %v598 = vsub.f32 %v572, %v596
    %v599 = vpack.c.bf16 %v598, %v597
    %601 = vrot.lane.b32.xlu0 %v227, 112
    %v602 = vpop.permute.xlu0 %601
    %v605 = vsel %vm331, %v599, 0
    %607 = vmatprep.subr.bf16.mxu0 0
    %608 = vmatpush1.bf16.msra.mxu0 0
    %609 = vmatprep.subr.bf16.mxu0 0
    %610 = vmatpush1.bf16.msra.mxu0 0
    %611 = vmatprep.subr.bf16.mxu0 0
    %612 = vmatpush1.bf16.msra.mxu0 0
    %613 = vmatprep.subr.bf16.mxu0 0
    %614 = vmatpush1.bf16.msra.mxu0 0
    %615 = vmatprep.subr.bf16.mxu0 0
    %616 = vmatpush1.bf16.msra.mxu0 0
    %617 = vmatprep.subr.bf16.mxu0 0
    %618 = vmatpush1.bf16.msra.mxu0 0
    %619 = vmatprep.subr.bf16.mxu0 0
    %620 = vmatpush1.bf16.msra.mxu0 0
    %621 = vmatprep.subr.bf16.mxu0 0
    %622 = vmatpush1.bf16.msra.mxu0 %v602
    %623 = vmatprep.subr.bf16.mxu0 0
    %624 = vmatpush2.bf16.msra.mxu0 0
    %625 = vmatprep.subr.bf16.mxu0 0
    %626 = vmatpush2.bf16.msra.mxu0 0
    %627 = vmatprep.subr.bf16.mxu0 0
    %628 = vmatpush2.bf16.msra.mxu0 0
    %629 = vmatprep.subr.bf16.mxu0 0
    %630 = vmatpush2.bf16.msra.mxu0 0
    %631 = vmatprep.subr.bf16.mxu0 0
    %632 = vmatpush2.bf16.msra.mxu0 0
    %633 = vmatprep.subr.bf16.mxu0 0
    %634 = vmatpush2.bf16.msra.mxu0 0
    %635 = vmatprep.subr.bf16.mxu0 0
    %636 = vmatpush2.bf16.msra.mxu0 0
    %637 = vmatprep.subr.bf16.mxu0 0
    %638 = vmatpush2.bf16.msra.mxu0 0
    %639 = vmatprep.mubr.bf16.mxu0 0
    %640 = vmatmul.mubr.bf16.gmra.mxu0 %v605
    %v641 = vpop.f32.mrf.mxu0
    %v642 = vadd.f32 0.0, %v641
    %v643 = vpop.f32.mrf.mxu0
    %v644 = vpop.f32.mrf.mxu0
    %v645 = vadd.f32 0.0, %v644
    %v646 = vpop.f32.mrf.mxu0
    %647 = vdwg.mxu0
    %v648 = vmul.f32 %v642, %v642
    %v649 = vmul.f32 %v645, %v645
    %v650 = vsel %vm331, %v648, 0.0
    %651 = vadd.xlane.f32.xlu0 %v650
    %v652 = vpop.xlane.xlu0 %651
    %v653 = vsel %vm331, %v649, 0.0
    %654 = vadd.xlane.f32.xlu0 %v653
    %v655 = vpop.xlane.xlu0 %654
    %v656 = vmul.f32 %v652, %v434
    %v657 = vmul.f32 %v655, %v434
    %v658 = vadd.f32 %v656, 1e-05
    %v659 = vadd.f32 %v657, 1e-05
    %v660 = vrsqrt.pop %v658
    %v661 = vrsqrt.pop %v659
    %v662 = vmul.f32 %v642, %v660
    %v663 = vmul.f32 %v645, %v661
    %v664 = vmul.f32 %v662, %v446
    %v665 = vmul.f32 %v663, %v446
    %668 = vrot.lane.b32.xlu0 %v664, 16
    %v669 = vpop.permute.xlu0 %668
    %670 = vrot.lane.b32.xlu0 %v665, 16
    %v671 = vpop.permute.xlu0 %670
    %v674 = vsel %vm331, %v447, %v669
    %v675 = vsel %vm331, %v448, %v671
    %v676 = vpack.c.bf16 %v675, %v674
    %v677 = vld [vmem:[#allocation6] sm:$0xf]
    %v678 = vld [vmem:[#allocation6 + $0x4] sm:$0xf]
    %v679 = vld [vmem:[#allocation6 + $0x8] sm:$0xf]
    %v680 = vld [vmem:[#allocation6 + $0xc] sm:$0xf]
    %v685 = vunpack.c.l.b16 %v677
    %v686 = vunpack.c.l.b16 %v678
    %v687 = vunpack.c.l.b16 %v679
    %v688 = vunpack.c.l.b16 %v680
    %v689 = vpack.c.b16 %v686, %v685
    %v690 = vpack.c.b16 %v688, %v687
    %v694 = vsel %vm100, %v676, 0
    %696 = vmatprep.subr.bf16.mxu0 0
    %697 = vmatpush1.bf16.msra.mxu0 0
    %698 = vmatprep.subr.bf16.mxu0 0
    %699 = vmatpush1.bf16.msra.mxu0 0
    %700 = vmatprep.subr.bf16.mxu0 0
    %701 = vmatpush1.bf16.msra.mxu0 0
    %702 = vmatprep.subr.bf16.mxu0 0
    %703 = vmatpush1.bf16.msra.mxu0 0
    %704 = vmatprep.subr.bf16.mxu0 0
    %705 = vmatpush1.bf16.msra.mxu0 0
    %706 = vmatprep.subr.bf16.mxu0 0
    %707 = vmatpush1.bf16.msra.mxu0 0
    %708 = vmatprep.subr.bf16.mxu0 0
    %709 = vmatpush1.bf16.msra.mxu0 %v690
    %710 = vmatprep.subr.bf16.mxu0 0
    %711 = vmatpush1.bf16.msra.mxu0 %v689
    %712 = vmatprep.subr.bf16.mxu0 0
    %713 = vmatpush2.bf16.msra.mxu0 0
    %714 = vmatprep.subr.bf16.mxu0 0
    %715 = vmatpush2.bf16.msra.mxu0 0
    %716 = vmatprep.subr.bf16.mxu0 0
    %717 = vmatpush2.bf16.msra.mxu0 0
    %718 = vmatprep.subr.bf16.mxu0 0
    %719 = vmatpush2.bf16.msra.mxu0 0
    %720 = vmatprep.subr.bf16.mxu0 0
    %721 = vmatpush2.bf16.msra.mxu0 0
    %722 = vmatprep.subr.bf16.mxu0 0
    %723 = vmatpush2.bf16.msra.mxu0 0
    %724 = vmatprep.subr.bf16.mxu0 0
    %725 = vmatpush2.bf16.msra.mxu0 0
    %726 = vmatprep.subr.bf16.mxu0 0
    %727 = vmatpush2.bf16.msra.mxu0 0
    %728 = vmatprep.mubr.bf16.mxu0 0
    %729 = vmatmul.mubr.bf16.gmra.mxu0 %v694
    %v730 = vpop.f32.mrf.mxu0
    %v731 = vadd.f32 0.0, %v730
    %v732 = vpop.f32.mrf.mxu0
    %v733 = vpop.f32.mrf.mxu0
    %v734 = vadd.f32 0.0, %v733
    %v735 = vpop.f32.mrf.mxu0
    %736 = vdwg.mxu0
    %v737 = vadd.f32 %v89, %v731
    %v738 = vadd.f32 %v90, %v734
    %v739 = vmul.f32 %v737, %v737
    %v740 = vmul.f32 %v738, %v738
    %v741 = vsel %vm100, %v739, 0.0
    %742 = vadd.xlane.f32.xlu0 %v741
    %v743 = vpop.xlane.xlu0 %742
    %v744 = vsel %vm100, %v740, 0.0
    %745 = vadd.xlane.f32.xlu0 %v744
    %v746 = vpop.xlane.xlu0 %745
    %v747 = vmul.f32 %v743, %v107
    %v748 = vmul.f32 %v746, %v107
    %v749 = vadd.f32 %v747, 1e-05
    %v750 = vadd.f32 %v748, 1e-05
    %v751 = vrsqrt.pop %v749
    %v752 = vrsqrt.pop %v750
    %v753 = vmul.f32 %v737, %v751
    %v754 = vmul.f32 %v738, %v752
    %v755 = vlaneseq
    %v756 = vshrl.u32 %v755, 7
    %v757 = vsub.s32 0, %v756
    %v758 = vrot.slane %v92, %v757
    %v759 = vmul.f32 %v753, %v758
    %v760 = vmul.f32 %v754, %v758
    %v761 = vpack.c.bf16 %v760, %v759
    %v762 = vld [vmem:[%s4] sm:$0xff]
    %v763 = vld [vmem:[%s4 + $0x8] sm:$0xff]
    %v764 = vld [vmem:[%s4 + $0x10] sm:$0xff]
    %v765 = vld [vmem:[%s4 + $0x18] sm:$0xff]
    %v770 = vunpack.c.l.b16 %v762
    %v771 = vunpack.c.h.b16 %v762
    %v772 = vunpack.c.l.b16 %v763
    %v773 = vunpack.c.h.b16 %v763
    %v774 = vunpack.c.l.b16 %v764
    %v775 = vunpack.c.h.b16 %v764
    %v776 = vunpack.c.l.b16 %v765
    %v777 = vunpack.c.h.b16 %v765
    %v778 = vpack.c.b16 %v772, %v770
    %v779 = vpack.c.b16 %v773, %v771
    %v780 = vpack.c.b16 %v776, %v774
    %v781 = vpack.c.b16 %v777, %v775
    %v787 = vsel %vm100, %v761, 0
    %789 = vmatprep.subr.bf16.mxu0 0
    %790 = vmatpush1.bf16.msra.mxu0 0
    %791 = vmatprep.subr.bf16.mxu0 0
    %792 = vmatpush1.bf16.msra.mxu0 0
    %793 = vmatprep.subr.bf16.mxu0 0
    %794 = vmatpush1.bf16.msra.mxu0 0
    %795 = vmatprep.subr.bf16.mxu0 0
    %796 = vmatpush1.bf16.msra.mxu0 0
    %797 = vmatprep.subr.bf16.mxu0 0
    %798 = vmatpush1.bf16.msra.mxu0 0
    %799 = vmatprep.subr.bf16.mxu0 0
    %800 = vmatpush1.bf16.msra.mxu0 0
    %801 = vmatprep.subr.bf16.mxu0 %v781
    %802 = vmatpush1.bf16.msra.mxu0 %v780
    %803 = vmatprep.subr.bf16.mxu0 %v779
    %804 = vmatpush1.bf16.msra.mxu0 %v778
    %805 = vmatprep.subr.bf16.mxu0 0
    %806 = vmatpush2.bf16.msra.mxu0 0
    %807 = vmatprep.subr.bf16.mxu0 0
    %808 = vmatpush2.bf16.msra.mxu0 0
    %809 = vmatprep.subr.bf16.mxu0 0
    %810 = vmatpush2.bf16.msra.mxu0 0
    %811 = vmatprep.subr.bf16.mxu0 0
    %812 = vmatpush2.bf16.msra.mxu0 0
    %813 = vmatprep.subr.bf16.mxu0 0
    %814 = vmatpush2.bf16.msra.mxu0 0
    %815 = vmatprep.subr.bf16.mxu0 0
    %816 = vmatpush2.bf16.msra.mxu0 0
    %817 = vmatprep.subr.bf16.mxu0 0
    %818 = vmatpush2.bf16.msra.mxu0 0
    %819 = vmatprep.subr.bf16.mxu0 0
    %820 = vmatpush2.bf16.msra.mxu0 0
    %821 = vmatprep.mubr.bf16.mxu0 0
    %822 = vmatmul.mubr.bf16.gmra.mxu0 %v787
    %v823 = vpop.f32.mrf.mxu0
    %v824 = vadd.f32 0.0, %v823
    %v825 = vpop.f32.mrf.mxu0
    %v826 = vadd.f32 0.0, %v825
    %v827 = vpop.f32.mrf.mxu0
    %v828 = vadd.f32 0.0, %v827
    %v829 = vpop.f32.mrf.mxu0
    %v830 = vadd.f32 0.0, %v829
    %831 = vdwg.mxu0
    %v832 = vsub.f32 0.0, %v824
    %v833 = vsub.f32 0.0, %v828
    %v834 = vmin.f32 %v832, 60.0
    %v835 = vmin.f32 %v833, 60.0
    %v836 = vmul.f32 %v834, 1.442695
    %v837 = vpow.pop %v836
    %v838 = vmul.f32 %v835, 1.442695
    %v839 = vpow.pop %v838
    %v840 = vadd.f32 %v837, 1.0
    %v841 = vadd.f32 %v839, 1.0
    %v842 = vrcp.pop %v840
    %v843 = vrcp.pop %v841
    %v844 = vmul.f32 %v824, %v842
    %v845 = vmul.f32 %v828, %v843
    %850 = vrot.lane.b32.xlu0 %v824, 32
    %v851 = vpop.permute.xlu0 %850
    %852 = vrot.lane.b32.xlu0 %v826, 32
    %v853 = vpop.permute.xlu0 %852
    %854 = vrot.lane.b32.xlu0 %v828, 32
    %v855 = vpop.permute.xlu0 %854
    %856 = vrot.lane.b32.xlu0 %v830, 32
    %v857 = vpop.permute.xlu0 %856
    %v858 = vsel %vm100, %v851, %v853
    %v859 = vsel %vm100, %v855, %v857
    %v862 = vmul.f32 %v844, %v858
    %v863 = vmul.f32 %v845, %v859
    %v864 = vpack.c.bf16 %v863, %v862
    %v865 = vld [vmem:[%s5] sm:$0xf]
    %v866 = vld [vmem:[%s5 + $0x4] sm:$0xf]
    %v867 = vld [vmem:[%s5 + $0x8] sm:$0xf]
    %v868 = vld [vmem:[%s5 + $0xc] sm:$0xf]
    %v869 = vld [vmem:[%s5 + $0x10] sm:$0xf]
    %v870 = vld [vmem:[%s5 + $0x14] sm:$0xf]
    %v871 = vld [vmem:[%s5 + $0x18] sm:$0xf]
    %v872 = vld [vmem:[%s5 + $0x1c] sm:$0xf]
    %v873 = vld [vmem:[%s5 + $0x20] sm:$0xf]
    %v874 = vld [vmem:[%s5 + $0x24] sm:$0xf]
    %v875 = vld [vmem:[%s5 + $0x28] sm:$0xf]
    %v876 = vld [vmem:[%s5 + $0x2c] sm:$0xf]
    %v889 = vunpack.c.l.b16 %v865
    %v890 = vunpack.c.l.b16 %v866
    %v891 = vunpack.c.l.b16 %v867
    %v892 = vunpack.c.l.b16 %v868
    %v893 = vunpack.c.l.b16 %v869
    %v894 = vunpack.c.l.b16 %v870
    %v895 = vunpack.c.l.b16 %v871
    %v896 = vunpack.c.l.b16 %v872
    %v897 = vunpack.c.l.b16 %v873
    %v898 = vunpack.c.l.b16 %v874
    %v899 = vunpack.c.l.b16 %v875
    %v900 = vunpack.c.l.b16 %v876
    %v901 = vpack.c.b16 %v890, %v889
    %v902 = vpack.c.b16 %v892, %v891
    %v903 = vpack.c.b16 %v894, %v893
    %v904 = vpack.c.b16 %v896, %v895
    %v905 = vpack.c.b16 %v898, %v897
    %v906 = vpack.c.b16 %v900, %v899
    %vm913 = vcmask 785408
    %v915 = vsel %vm913, %v864, 0
    %917 = vmatprep.subr.bf16.mxu0 0
    %918 = vmatpush1.bf16.msra.mxu0 0
    %919 = vmatprep.subr.bf16.mxu0 0
    %920 = vmatpush1.bf16.msra.mxu0 0
    %921 = vmatprep.subr.bf16.mxu0 0
    %922 = vmatpush1.bf16.msra.mxu0 %v906
    %923 = vmatprep.subr.bf16.mxu0 0
    %924 = vmatpush1.bf16.msra.mxu0 %v905
    %925 = vmatprep.subr.bf16.mxu0 0
    %926 = vmatpush1.bf16.msra.mxu0 %v904
    %927 = vmatprep.subr.bf16.mxu0 0
    %928 = vmatpush1.bf16.msra.mxu0 %v903
    %929 = vmatprep.subr.bf16.mxu0 0
    %930 = vmatpush1.bf16.msra.mxu0 %v902
    %931 = vmatprep.subr.bf16.mxu0 0
    %932 = vmatpush1.bf16.msra.mxu0 %v901
    %933 = vmatprep.subr.bf16.mxu0 0
    %934 = vmatpush2.bf16.msra.mxu0 0
    %935 = vmatprep.subr.bf16.mxu0 0
    %936 = vmatpush2.bf16.msra.mxu0 0
    %937 = vmatprep.subr.bf16.mxu0 0
    %938 = vmatpush2.bf16.msra.mxu0 0
    %939 = vmatprep.subr.bf16.mxu0 0
    %940 = vmatpush2.bf16.msra.mxu0 0
    %941 = vmatprep.subr.bf16.mxu0 0
    %942 = vmatpush2.bf16.msra.mxu0 0
    %943 = vmatprep.subr.bf16.mxu0 0
    %944 = vmatpush2.bf16.msra.mxu0 0
    %945 = vmatprep.subr.bf16.mxu0 0
    %946 = vmatpush2.bf16.msra.mxu0 0
    %947 = vmatprep.subr.bf16.mxu0 0
    %948 = vmatpush2.bf16.msra.mxu0 0
    %949 = vmatprep.mubr.bf16.mxu0 0
    %950 = vmatmul.mubr.bf16.gmra.mxu0 %v915
    %v951 = vpop.f32.mrf.mxu0
    %v952 = vadd.f32 0.0, %v951
    %v953 = vpop.f32.mrf.mxu0
    %v954 = vpop.f32.mrf.mxu0
    %v955 = vadd.f32 0.0, %v954
    %v956 = vpop.f32.mrf.mxu0
    %957 = vdwg.mxu0
    %v958 = vadd.f32 %v737, %v952
    %v959 = vadd.f32 %v738, %v955
    %960 = vst.msk [vmem:[#allocation11] sm:$0xff] %vm100, %v958
    %961 = vst.msk [vmem:[#allocation11 + $0x8] sm:$0xff] %vm100, %v959
    // Predicated region
    $region54: #{_forward.1} parent=1 // pred_check
      _
    $region55: #{_forward.1} parent=1 // pred_check_branch
      %963 = sbr.rel (0) target = $region57
    $region56: #{_forward.1} parent=1 // pred_region
      %s965 = ssub.s32 256, 256
      %966 = vsyncadd [#allocation5], %s965
      %s967 = sshll.u32 [#allocation11], 4
      %s968 = int_to_ptr.vmem [resolvable:$true] %s967
      %973 = dma.vmem_to_hbm [thread:$0]  %s968, 256, %s9, [#allocation5], 128, 128, 8
    $region57: #{_forward.1} parent=1 // pred_fallthru
      _
    // Predicated region
    $region58: #{_forward.1} parent=1 // pred_check
      _
    $region59: #{_forward.1} parent=1 // pred_check_branch
      %975 = sbr.rel (0) target = $region61
    $region60: #{_forward.1} parent=1 // pred_region
      %976 = dma.done [#allocation5], 256
    $region61: #{_forward.1} parent=1 // pred_fallthru
      _
    %977 = vsyncpa [#allocation4], 1
    %978 = vsyncpa [#allocation7], 1
    %979 = vsyncpa [#allocation10], 1
    %980 = vsyncpa [#allocation5], 1

</llo_original>
